<compile_context>
chip_gen: v5e
topology: v5e:2x2
jax: 0.10.0
libtpu: 0.0.40
codegen_flags: <defaults>
</compile_context>

<pallas_src>
import jax
import jax.numpy as jnp
from jax.experimental import pallas as pl
from jax.experimental.pallas import tpu as pltpu


def _spatial_gate_kernel(x_ref, w_ref, b_ref, o_ref):
    # x_ref: (1, C, T) VMEM   w_ref: (C,) SMEM   b_ref: (1,) SMEM   o_ref: (1, C, T)
    x = x_ref[...]                               # (1, C, T) in input dtype
    xf = x.astype(jnp.float32)                   # accumulate / gate in f32
    c_dim = x.shape[1]
    t_dim = x.shape[2]

    # 1x1 conv (C -> 1): per-pixel channel dot product, unrolled over the small
    # channel (sublane) axis as scalar * vector FMAs on the VPU.
    cal = jnp.full((1, 1, t_dim), b_ref[0], dtype=jnp.float32)
    for c in range(c_dim):                       # static unroll (C is small)
        cal = cal + w_ref[c] * xf[:, c:c + 1, :]

    gate = jax.nn.sigmoid(cal)                   # (1, 1, T) on the EUP
    o_ref[...] = (gate * xf).astype(o_ref.dtype)  # broadcast gate over C


def _choose_spatial_tile(hw, c, dtype_bytes):
    """Lane-dense spatial tile: multiple of 128, block bytes ~<= 2 MiB."""
    target_block_bytes = 2 * 1024 * 1024
    t = (target_block_bytes // max(1, c * dtype_bytes)) // 128 * 128
    t = max(128, t)
    if hw % 128 == 0:
        return min(hw, t)
    # Fallback: block spans the full spatial dim (allowed when == array dim).
    return hw


def spatial_gate_2d(x_nchw, weight, bias):
    """x_nchw: (N, C, H, W); weight: (1, C, 1, 1); bias: (1,)"""
    N, C, H, W = x_nchw.shape
    HW = H * W

    # Free reshapes only — layout stays NCHW with HW as the fast (lane) axis.
    x_k = x_nchw.reshape(N, C, HW)                       # (N, C, HW)
    w_k = weight.reshape(C).astype(jnp.float32)          # (C,)  -> SMEM
    b_k = bias.reshape(1).astype(jnp.float32)            # (1,)  -> SMEM

    t_hw = _choose_spatial_tile(HW, C, x_k.dtype.itemsize)
    grid = (N, pl.cdiv(HW, t_hw))

    out_k = pl.pallas_call(
        _spatial_gate_kernel,
        out_shape=jax.ShapeDtypeStruct((N, C, HW), x_k.dtype),
        grid_spec=pltpu.PrefetchScalarGridSpec(
            num_scalar_prefetch=0,
            grid=grid,
            in_specs=[
                pl.BlockSpec((1, C, t_hw), lambda n, s: (n, 0, s)),
                pl.BlockSpec(memory_space=pltpu.MemorySpace.SMEM),
                pl.BlockSpec(memory_space=pltpu.MemorySpace.SMEM),
            ],
            out_specs=pl.BlockSpec((1, C, t_hw), lambda n, s: (n, 0, s)),
        ),
        compiler_params=pltpu.CompilerParams(
            dimension_semantics=("parallel", "parallel"),
        ),
    )(x_k, w_k, b_k)

    return out_k.reshape(N, C, H, W)


if __name__ == "__main__":
    key = jax.random.PRNGKey(0)
    kx, kw, kb = jax.random.split(key, 3)

    N, C, H, W = 2, 4, 16, 16
    x = jax.random.normal(kx, (N, C, H, W), dtype=jnp.float32)

    # Deterministic "Conv2d(C, 1, kernel_size=1)" parameters.
    weight = jax.random.normal(kw, (1, C, 1, 1), dtype=jnp.float32) * 0.1
    bias = jax.random.normal(kb, (1,), dtype=jnp.float32) * 0.1

    out = spatial_gate_2d(x, weight, bias)
    out = jax.block_until_ready(out)

    # Reference check in plain JAX (same math, NCHW).
    cal_ref = jnp.einsum("nchw,c->nhw", x, weight.reshape(C)) + bias[0]
    ref = jax.nn.sigmoid(cal_ref)[:, None, :, :] * x
    assert out.shape == (N, C, H, W)
    assert jnp.allclose(out, ref, atol=1e-5, rtol=1e-5), "mismatch vs reference"

    print("KERNEL_OK")
</pallas_src>

<mosaic_0001>
module attributes {stable_mosaic.version = 11 : i64} {
  func.func @_spatial_gate_kernel(%arg0: i32, %arg1: i32, %arg2: memref<1x4x256xf32, #tpu.memory_space<vmem>>, %arg3: memref<4xf32, #tpu.memory_space<smem>>, %arg4: memref<1xf32, #tpu.memory_space<smem>>, %arg5: memref<1x4x256xf32, #tpu.memory_space<vmem>>) attributes {dimension_semantics = [#tpu.dimension_semantics<parallel>, #tpu.dimension_semantics<parallel>], iteration_bounds = array<i64: 2, 1>, scalar_prefetch = 0 : i64, scratch_operands = 0 : i64, tpu.core_type = #tpu.core_type<tc>, window_params = [{transform_indices = @transform_0, window_bounds = array<i64: 1, 4, 256>}, {transform_indices = @transform_1, window_bounds = array<i64: 4>}, {transform_indices = @transform_2, window_bounds = array<i64: 1>}, {transform_indices = @transform_3, window_bounds = array<i64: 1, 4, 256>}]} {
    %c0 = arith.constant 0 : index
    %c0_0 = arith.constant 0 : index
    %c0_1 = arith.constant 0 : index
    %0 = vector.load %arg2[%c0, %c0_0, %c0_1] : memref<1x4x256xf32, #tpu.memory_space<vmem>>, vector<1x4x256xf32>
    %c0_2 = arith.constant 0 : index
    %1 = memref.load %arg4[%c0_2] : memref<1xf32, #tpu.memory_space<smem>>
    %2 = vector.broadcast %1 : f32 to vector<1x1x256xf32>
    %c0_3 = arith.constant 0 : index
    %3 = memref.load %arg3[%c0_3] : memref<4xf32, #tpu.memory_space<smem>>
    %4 = vector.extract_strided_slice %0 {offsets = [0, 0, 0], sizes = [1, 1, 256], strides = [1, 1, 1]} : vector<1x4x256xf32> to vector<1x1x256xf32>
    %5 = vector.broadcast %3 : f32 to vector<1x1x256xf32>
    %6 = arith.mulf %5, %4 : vector<1x1x256xf32>
    %7 = arith.addf %2, %6 : vector<1x1x256xf32>
    %c1 = arith.constant 1 : index
    %8 = memref.load %arg3[%c1] : memref<4xf32, #tpu.memory_space<smem>>
    %9 = vector.extract_strided_slice %0 {offsets = [0, 1, 0], sizes = [1, 1, 256], strides = [1, 1, 1]} : vector<1x4x256xf32> to vector<1x1x256xf32>
    %10 = vector.broadcast %8 : f32 to vector<1x1x256xf32>
    %11 = arith.mulf %10, %9 : vector<1x1x256xf32>
    %12 = arith.addf %7, %11 : vector<1x1x256xf32>
    %c2 = arith.constant 2 : index
    %13 = memref.load %arg3[%c2] : memref<4xf32, #tpu.memory_space<smem>>
    %14 = vector.extract_strided_slice %0 {offsets = [0, 2, 0], sizes = [1, 1, 256], strides = [1, 1, 1]} : vector<1x4x256xf32> to vector<1x1x256xf32>
    %15 = vector.broadcast %13 : f32 to vector<1x1x256xf32>
    %16 = arith.mulf %15, %14 : vector<1x1x256xf32>
    %17 = arith.addf %12, %16 : vector<1x1x256xf32>
    %c3 = arith.constant 3 : index
    %18 = memref.load %arg3[%c3] : memref<4xf32, #tpu.memory_space<smem>>
    %19 = vector.extract_strided_slice %0 {offsets = [0, 3, 0], sizes = [1, 1, 256], strides = [1, 1, 1]} : vector<1x4x256xf32> to vector<1x1x256xf32>
    %20 = vector.broadcast %18 : f32 to vector<1x1x256xf32>
    %21 = arith.mulf %20, %19 : vector<1x1x256xf32>
    %22 = arith.addf %17, %21 : vector<1x1x256xf32>
    %23 = arith.negf %22 : vector<1x1x256xf32>
    %24 = math.exp %23 : vector<1x1x256xf32>
    %cst = arith.constant 1.000000e+00 : f32
    %25 = vector.broadcast %cst : f32 to vector<1x1x256xf32>
    %26 = arith.addf %25, %24 : vector<1x1x256xf32>
    %27 = arith.divf %25, %26 : vector<1x1x256xf32>
    %28 = vector.broadcast %27 : vector<1x1x256xf32> to vector<1x4x256xf32>
    %29 = arith.mulf %28, %0 : vector<1x4x256xf32>
    %c0_4 = arith.constant 0 : index
    %c0_5 = arith.constant 0 : index
    %c0_6 = arith.constant 0 : index
    %30 = vector.load %arg5[%c0_4, %c0_5, %c0_6] : memref<1x4x256xf32, #tpu.memory_space<vmem>>, vector<1x4x256xf32>
    tpu.vector_store %arg5[%c0_4, %c0_5, %c0_6], %29 {strides = array<i32>} : memref<1x4x256xf32, #tpu.memory_space<vmem>>, vector<1x4x256xf32>,
    return
  }
  func.func @transform_0(%arg0: i32, %arg1: i32) -> (i32, i32, i32) {
    %c0_i32 = arith.constant 0 : i32
    %c0_i32_0 = arith.constant 0 : i32
    return %arg0, %c0_i32, %arg1 : i32, i32, i32
  }
  func.func @transform_1(%arg0: i32, %arg1: i32) -> i32 {
    %c0_i32 = arith.constant 0 : i32
    %c0_i32_0 = arith.constant 0 : i32
    return %c0_i32 : i32
  }
  func.func @transform_2(%arg0: i32, %arg1: i32) -> i32 {
    %c0_i32 = arith.constant 0 : i32
    %c0_i32_0 = arith.constant 0 : i32
    return %c0_i32 : i32
  }
  func.func @transform_3(%arg0: i32, %arg1: i32) -> (i32, i32, i32) {
    %c0_i32 = arith.constant 0 : i32
    %c0_i32_0 = arith.constant 0 : i32
    return %arg0, %c0_i32, %arg1 : i32, i32, i32
  }
}

</mosaic_0001>

<llo_original>
// kernel: tpu_custom_call.1
$region0: #{tpu_custom_call.1}
  #allocation0 [shape = 'u32[]', space=smem, size = 0x4, offset = 0x4, fixed_abs, tag = 'smem constant byte address 0x4 - core index']
  #allocation1 [shape = 'u32[72,128]{1,0:T(1,128)}', space=vmem, size = 0x9000, scoped, tag = 'internal scratch']
  #allocation2 [shape = 'f32[1]{0:T(128)S(6)}', space=smem, size = 0x200, scoped, tag = 'scoped memory for tpu_custom_call.1']
  %s0 = inlined_call_operand.hbm [shape: f32[2,4,256], index: 0, kind: input, shape index: {}]
  %s1 = inlined_call_operand.vmem [shape: f32[4], index: 1, kind: input, shape index: {}]
  %s2 = inlined_call_operand.<no memory space> [shape: f32[1], index: 2, kind: input, shape index: {}]
  %s3 = inlined_call_operand.hbm [shape: f32[2,4,256], index: 3, kind: output, shape index: {}]
  %s4 = sld [smem:[#allocation0]]
  $region53: #{tpu_custom_call.1} parent=0
    _
  %s6 = ssub.s32 1, %s4
  %s7 = scalar_select 0, %s6, %s4
  %8 = sst [smem:[#allocation2]] %s2
  $region1: #{tpu_custom_call.1} parent=0
    #allocation3 [shape = 'u8[8192]{0}', space=vmem, size = 0x2000, scoped, tag = 'input window, operand 0']
    #allocation4 [shape = 's32[2]{0}', space=sflag, size = 0x8, scoped, tag = 'scoped memory for tpu_custom_call.1']
    #allocation5 [shape = 's32[2]{0}', space=sflag, size = 0x8, scoped, tag = 'scoped memory for tpu_custom_call.1']
    #allocation6 [shape = 's32[2]{0}', space=sflag, size = 0x8, scoped, tag = 'scoped memory for tpu_custom_call.1']
    #allocation7 [shape = 'u8[512]{0}', space=smem, size = 0x200, scoped, tag = 'input window, operand 1, single buffered']
    #allocation8 [shape = 'u8[8192]{0}', space=vmem, size = 0x2000, scoped, tag = 'output window, operand 0']
    %9 = vsyncpa [#allocation4], 0
    %s10 = scalar_lea.sflag [#allocation4], 1
    %11 = vsyncpa %s10, 0
    %12 = vsyncpa [#allocation6], 0
    %13 = vsyncpa [#allocation5], 0
    %s14 = scalar_lea.sflag [#allocation5], 1
    %15 = vsyncpa %s14, 0
    loop: start=0, step=1, limit=4
    $region2: #{tpu_custom_call.1} parent=1 // loop_pre_header
      _
    $region3: #{tpu_custom_call.1} parent=1 // loop_header
      %s17 = sphi 0, %s21
      %p18 = scmp.ge.s32.totalorder %s17, 4
      %s24 = sphi 0, %s36
      %s25 = sphi 0, %s32
      %s26 = sphi 0, %s24
      %s27 = sphi 0, %s25
      %s28 = sphi 0, %s26
      %s29 = sphi 0, %s27
      %s41 = sphi 0, %s43
      %s44 = sphi 0, %s41
      %s45 = sphi 0, %s44
      %s61 = sphi 0, %s45
      %s65 = sphi 0, %s65
      %s67 = sphi 0, %s65
      %s68 = sphi 0, %s67
      %s82 = sphi 0, %s68
      %s86 = sphi 0, %s86
      %s88 = sphi 0, %s86
      %s89 = sphi 0, %s88
      %s103 = sphi 0, %s89
      %s111 = sphi 0, %s113
      %s114 = sphi 0, %s111
      %s115 = sphi 0, %s114
      %s131 = sphi 0, %s115
    $region4: #{tpu_custom_call.1} parent=1 // loop_header_branch
      %20 = sbr.rel (%p18) target = $region8
    $region5: #{tpu_custom_call.1} parent=1 // loop_body
      %s22 = ssub.s32 %s17, 1
      %s23 = ssub.s32 %s17, 2
      %s30 = sadd.s32 1, %s25
      %p31 = scmp.ge.s32.totalorder %s30, 1
      %s32 = scalar_select %p31, 0, %s30
      %s33 = sadd.s32 1, %s24
      %s34 = scalar_select %p31, %s33, %s24
      %p35 = scmp.ge.s32.totalorder %s34, 2
      %s36 = scalar_select %p35, 0, %s34
      %s37 = ssub.s32 %s24, %s36
      %s38 = ssub.s32 %s25, %s32
      %s39 = sor.u32 %s37, %s38
      %p40 = scmp.eq.s32.totalorder %s39, 0
      %s42 = sadd.s32 %s41, 1
      %s43 = scalar_select %p40, %s41, %s42
      %p46 = pneg %p40
      %p47 = scmp.eq.s32.totalorder %s17, 1
      %p48 = por %p46, %p47
      %p49 = scmp.ne.s32.totalorder %s41, %s44
      %p50 = scmp.eq.s32.totalorder %s17, 0
      %p51 = por %p49, %p50
      %p52 = scmp.ne.s32.totalorder %s41, %s44
      %p53 = scmp.eq.s32.totalorder %s22, 1
      %p54 = por %p52, %p53
      %p55 = scmp.ne.s32.totalorder %s44, %s45
      %p56 = scmp.eq.s32.totalorder %s22, 0
      %p57 = por %p55, %p56
      %p58 = scmp.ne.s32.totalorder %s44, %s45
      %p59 = scmp.eq.s32.totalorder %s23, 1
      %p60 = por %p58, %p59
      %p62 = scmp.ne.s32.totalorder %s45, %s61
      %p63 = scmp.eq.s32.totalorder %s23, 0
      %p64 = por %p62, %p63
      %s66 = sadd.s32 %s65, 1
      %p69 = scmp.eq.s32.totalorder %s17, 1
      %p70 = scmp.ne.s32.totalorder %s65, %s67
      %p71 = scmp.eq.s32.totalorder %s17, 0
      %p72 = por %p70, %p71
      %p73 = scmp.ne.s32.totalorder %s65, %s67
      %p74 = scmp.eq.s32.totalorder %s22, 1
      %p75 = por %p73, %p74
      %p76 = scmp.ne.s32.totalorder %s67, %s68
      %p77 = scmp.eq.s32.totalorder %s22, 0
      %p78 = por %p76, %p77
      %p79 = scmp.ne.s32.totalorder %s67, %s68
      %p80 = scmp.eq.s32.totalorder %s23, 1
      %p81 = por %p79, %p80
      %p83 = scmp.ne.s32.totalorder %s68, %s82
      %p84 = scmp.eq.s32.totalorder %s23, 0
      %p85 = por %p83, %p84
      %s87 = sadd.s32 %s86, 1
      %p90 = scmp.eq.s32.totalorder %s17, 1
      %p91 = scmp.ne.s32.totalorder %s86, %s88
      %p92 = scmp.eq.s32.totalorder %s17, 0
      %p93 = por %p91, %p92
      %p94 = scmp.ne.s32.totalorder %s86, %s88
      %p95 = scmp.eq.s32.totalorder %s22, 1
      %p96 = por %p94, %p95
      %p97 = scmp.ne.s32.totalorder %s88, %s89
      %p98 = scmp.eq.s32.totalorder %s22, 0
      %p99 = por %p97, %p98
      %p100 = scmp.ne.s32.totalorder %s88, %s89
      %p101 = scmp.eq.s32.totalorder %s23, 1
      %p102 = por %p100, %p101
      %p104 = scmp.ne.s32.totalorder %s89, %s103
      %p105 = scmp.eq.s32.totalorder %s23, 0
      %p106 = por %p104, %p105
      %s107 = ssub.s32 %s24, %s36
      %s108 = ssub.s32 %s25, %s32
      %s109 = sor.u32 %s107, %s108
      %p110 = scmp.eq.s32.totalorder %s109, 0
      %s112 = sadd.s32 %s111, 1
      %s113 = scalar_select %p110, %s111, %s112
      %p116 = pneg %p110
      %p117 = scmp.eq.s32.totalorder %s17, 1
      %p118 = por %p116, %p117
      %p119 = scmp.ne.s32.totalorder %s111, %s114
      %p120 = scmp.eq.s32.totalorder %s17, 0
      %p121 = por %p119, %p120
      %p122 = scmp.ne.s32.totalorder %s111, %s114
      %p123 = scmp.eq.s32.totalorder %s22, 1
      %p124 = por %p122, %p123
      %p125 = scmp.ne.s32.totalorder %s114, %s115
      %p126 = scmp.eq.s32.totalorder %s22, 0
      %p127 = por %p125, %p126
      %p128 = scmp.ne.s32.totalorder %s114, %s115
      %p129 = scmp.eq.s32.totalorder %s23, 1
      %p130 = por %p128, %p129
      %p132 = scmp.ne.s32.totalorder %s115, %s131
      %p133 = scmp.eq.s32.totalorder %s23, 0
      %p134 = por %p132, %p133
      %p135 = scmp.le.s32.totalorder 1, %s17
      %p136 = scmp.lt.s32.totalorder %s17, 3
      %p137 = pnand %p135, %p136
      %p138 = pneg %p137
      // Predicated region
      $region9: #{tpu_custom_call.1} parent=5 // pred_check
        _
      $region10: #{tpu_custom_call.1} parent=5 // pred_check_branch
        %140 = sbr.rel (%p137) target = $region12
      $region11: #{tpu_custom_call.1} parent=5 // pred_region
        %s141 = ssub.s32 %s17, 1
        // Predicated region
        $region13: #{tpu_custom_call.1} parent=11 // pred_check
          %p142 = pneg %p78
        $region14: #{tpu_custom_call.1} parent=11 // pred_check_branch
          %144 = sbr.rel (%p142) target = $region16
        $region15: #{tpu_custom_call.1} parent=11 // pred_region
          %146 = vsyncadd [#allocation6], 0
          %s148 = sshll.u32 %s1, 4
          %s149 = int_to_ptr.vmem [resolvable:$true] %s148
          %151 = dma.vmem_to_smem %s149, 16, [#allocation7], [#allocation6]
        $region16: #{tpu_custom_call.1} parent=11 // pred_fallthru
          _
        // Predicated region
        $region17: #{tpu_custom_call.1} parent=11 // pred_check
          %p152 = pneg %p99
        $region18: #{tpu_custom_call.1} parent=11 // pred_check_branch
          %154 = sbr.rel (%p152) target = $region20
        $region19: #{tpu_custom_call.1} parent=11 // pred_region
          _
        $region20: #{tpu_custom_call.1} parent=11 // pred_fallthru
          _
      $region12: #{tpu_custom_call.1} parent=5 // pred_fallthru
        _
      %p155 = scmp.lt.s32.totalorder %s17, 2
      // Predicated region
      $region21: #{tpu_custom_call.1} parent=5 // pred_check
        %p156 = pneg %p155
      $region22: #{tpu_custom_call.1} parent=5 // pred_check_branch
        %158 = sbr.rel (%p156) target = $region24
      $region23: #{tpu_custom_call.1} parent=5 // pred_region
        // Predicated region
        $region25: #{tpu_custom_call.1} parent=23 // pred_check
          %p159 = pneg %p51
        $region26: #{tpu_custom_call.1} parent=23 // pred_check_branch
          %161 = sbr.rel (%p159) target = $region28
        $region27: #{tpu_custom_call.1} parent=23 // pred_region
          %s162 = sand.u32 %s41, 1
          %s163 = scalar_lea.sflag [#allocation4], %s162
          %s164 = sand.u32 %s41, 1
          %s165 = smul.addr %s164, 8
          %s166 = scalar_lea.vmem [#allocation3], %s165
          %s167 = smul.u32 2, %s25
          %169 = vsyncadd %s163, 0
          %s170 = smul.addr %s24, 2
          %s171 = sadd.s32 %s167, %s170
          %s172 = smul.addr %s171, 4
          %s173 = scalar_lea.hbm %s0, %s172
          %s175 = sshll.u32 %s173, 4
          %s176 = int_to_ptr.hbm [resolvable:$true] %s175
          %s177 = sshll.u32 %s166, 4
          %s178 = int_to_ptr.vmem [resolvable:$true] %s177
          %180 = dma.hbm_to_vmem [thread:$0]  %s176, 128, %s178, %s163
        $region28: #{tpu_custom_call.1} parent=23 // pred_fallthru
          _
      $region24: #{tpu_custom_call.1} parent=5 // pred_fallthru
        _
      %p181 = scmp.le.s32.totalorder 1, %s17
      %p182 = scmp.lt.s32.totalorder %s17, 3
      %p183 = pnand %p181, %p182
      %p184 = pneg %p183
      // Predicated region
      $region29: #{tpu_custom_call.1} parent=5 // pred_check
        _
      $region30: #{tpu_custom_call.1} parent=5 // pred_check_branch
        %186 = sbr.rel (%p183) target = $region32
      $region31: #{tpu_custom_call.1} parent=5 // pred_region
        %s187 = ssub.s32 %s17, 1
        %s188 = sand.u32 %s44, 1
        %s189 = scalar_lea.sflag [#allocation4], %s188
        %s190 = sand.u32 %s44, 1
        %s191 = smul.addr %s190, 8
        %s192 = scalar_lea.vmem [#allocation3], %s191
        // Predicated region
        $region33: #{tpu_custom_call.1} parent=31 // pred_check
          %p193 = pneg %p57
        $region34: #{tpu_custom_call.1} parent=31 // pred_check_branch
          %195 = sbr.rel (%p193) target = $region36
        $region35: #{tpu_custom_call.1} parent=31 // pred_region
          %197 = dma.done %s189, 128
        $region36: #{tpu_custom_call.1} parent=31 // pred_fallthru
          _
        // Predicated region
        $region37: #{tpu_custom_call.1} parent=31 // pred_check
          %p198 = pneg %p78
        $region38: #{tpu_custom_call.1} parent=31 // pred_check_branch
          %200 = sbr.rel (%p198) target = $region40
        $region39: #{tpu_custom_call.1} parent=31 // pred_region
          %202 = dma.done [#allocation6], 16
        $region40: #{tpu_custom_call.1} parent=31 // pred_fallthru
          _
        %203 = sfence
        %s204 = sand.u32 %s44, 1
        %s205 = scalar_lea.sflag [#allocation4], %s204
        %s206 = sand.u32 %s44, 1
        %s207 = smul.addr %s206, 8
        %s208 = scalar_lea.vmem [#allocation3], %s207
        %p209 = pneg %p57
        %p210 = pneg %p54
        %p211 = pneg %p78
        %p212 = pneg %p75
        %p213 = pneg %p99
        %p214 = pneg %p96
        %p215 = pneg %p127
        %p216 = pneg %p124
        %s217 = sand.u32 %s114, 1
        %s218 = scalar_lea.sflag [#allocation5], %s217
        %s219 = sand.u32 %s114, 1
        %s220 = smul.addr %s219, 8
        %s221 = scalar_lea.vmem [#allocation8], %s220
        %s222 = smul.u32 2, %s27
        %s223 = smul.u32 2, %s27
        %v224 = vld [vmem:[%s192] sm:$0xff]
        %s225 = sld [smem:[#allocation2]]
        %v226 = vstv %s225
        %s227 = sld [smem:[#allocation7]]
        %v228 = vstv %s227
        %v229 = vmul.f32 %v228, %v224
        %v230 = vadd.f32 %v226, %v229
        %s231 = sld [smem:[#allocation7 + $0x1]]
        %v232 = vstv %s231
        %v233 = vmul.f32 %v232, %v224
        %v235 = vrot.slane %v233, 5
        %v236 = vrot.slane %v235, 4
        %v238 = vadd.f32 %v230, %v236
        %s239 = sld [smem:[#allocation7 + $0x2]]
        %v240 = vstv %s239
        %v241 = vmul.f32 %v240, %v224
        %v243 = vrot.slane %v241, 6
        %v244 = vrot.slane %v243, 4
        %v246 = vadd.f32 %v238, %v244
        %s247 = sld [smem:[#allocation7 + $0x3]]
        %v248 = vstv %s247
        %v249 = vmul.f32 %v248, %v224
        %v251 = vrot.slane %v249, 7
        %v252 = vrot.slane %v251, 4
        %v254 = vadd.f32 %v246, %v252
        %v255 = vxor.u32 %v254, 2147483648
        %v256 = vmul.f32 %v255, 1.442695
        %v257 = vpow.pop %v256
        %v258 = vadd.f32 %v257, 1.0
        %v259 = vrcp.pop %v258
        %v260 = vmul.f32 %v258, %v259
        %v261 = vsub.f32 1.0, %v260
        %v262 = vmul.f32 %v259, %v261
        %v263 = vadd.f32 %v259, %v262
        %vm264 = vweird.f32 %v258
        %vm265 = vweird.f32 %v259
        %vm266 = vmor %vm264, %vm265
        %v267 = vsel %vm266, %v259, %v263
        %v268 = vand.u32 2147483647, %v258
        %vm269 = vcmp.eq.f32.partialorder %v268, 8.507059e+37
        %v270 = vand.u32 %v258, 2147483648
        %v271 = vor.u32 1.1754944e-38, %v270
        %v272 = vsel %vm269, %v271, %v267
        %v273 = vmul.f32 1.0, %v272
        %v275 = vperm.slane %v273, 0
        %v276 = vperm.slane %v273, 4
        %v279 = vperm.slane %v275, 0
        %v280 = vperm.slane %v276, 0
        %282 = vst [vmem:[#allocation1] ss:$2 sm:$0xff] %v224
        %v283 = vld.sshfl [vmem:[#allocation1] sm:$0xff pattern:$0x75316420]
        %v284 = vld.sshfl [vmem:[#allocation1 + $0x8] sm:$0xff pattern:$0x75316420]
        %v287 = vmul.f32 %v279, %v283
        %v288 = vmul.f32 %v280, %v284
        %v291 = vrot.slane %v288, 4
        %vm292 = vcmask 1043456
        %v293 = vsel %vm292, %v287, %v291
        %295 = vst [vmem:[%s221] sm:$0xff] %v293
        %s296 = sand.u32 %s114, 1
        %s297 = scalar_lea.sflag [#allocation5], %s296
        %s298 = sand.u32 %s114, 1
        %s299 = smul.addr %s298, 8
        %s300 = scalar_lea.vmem [#allocation8], %s299
        // Predicated region
        $region41: #{tpu_custom_call.1} parent=31 // pred_check
          %p301 = pneg %p124
        $region42: #{tpu_custom_call.1} parent=31 // pred_check_branch
          %303 = sbr.rel (%p301) target = $region44
        $region43: #{tpu_custom_call.1} parent=31 // pred_region
          %s304 = smul.u32 2, %s27
          %306 = vsyncadd %s297, 0
          %s307 = smul.addr %s26, 2
          %s308 = sadd.s32 %s304, %s307
          %s309 = smul.addr %s308, 4
          %s310 = scalar_lea.hbm %s3, %s309
          %s312 = sshll.u32 %s300, 4
          %s313 = int_to_ptr.vmem [resolvable:$true] %s312
          %s314 = sshll.u32 %s310, 4
          %s315 = int_to_ptr.hbm [resolvable:$true] %s314
          %317 = dma.vmem_to_hbm [thread:$0]  %s313, 128, %s315, %s297
        $region44: #{tpu_custom_call.1} parent=31 // pred_fallthru
          _
      $region32: #{tpu_custom_call.1} parent=5 // pred_fallthru
        _
      %p318 = scmp.le.s32.totalorder 2, %s17
      // Predicated region
      $region45: #{tpu_custom_call.1} parent=5 // pred_check
        %p319 = pneg %p318
      $region46: #{tpu_custom_call.1} parent=5 // pred_check_branch
        %321 = sbr.rel (%p319) target = $region48
      $region47: #{tpu_custom_call.1} parent=5 // pred_region
        %s322 = ssub.s32 %s17, 2
        // Predicated region
        $region49: #{tpu_custom_call.1} parent=47 // pred_check
          %p323 = pneg %p130
        $region50: #{tpu_custom_call.1} parent=47 // pred_check_branch
          %325 = sbr.rel (%p323) target = $region52
        $region51: #{tpu_custom_call.1} parent=47 // pred_region
          %s326 = sand.u32 %s115, 1
          %s327 = scalar_lea.sflag [#allocation5], %s326
          %s328 = sand.u32 %s115, 1
          %s329 = smul.addr %s328, 8
          %s330 = scalar_lea.vmem [#allocation8], %s329
          %332 = dma.done %s327, 128
        $region52: #{tpu_custom_call.1} parent=47 // pred_fallthru
          _
      $region48: #{tpu_custom_call.1} parent=5 // pred_fallthru
        _
    $region6: #{tpu_custom_call.1} parent=1 // loop_footer
      %s21 = sadd.s32 1, %s17
    $region7: #{tpu_custom_call.1} parent=1 // loop_footer_branch
      %16 = sbr.rel target = $region3
    $region8: #{tpu_custom_call.1} parent=1 // loop_exit
      _
    %333 = vsyncpa [#allocation4], 1
    %s334 = scalar_lea.sflag [#allocation4], 1
    %335 = vsyncpa %s334, 1
    %336 = vsyncpa [#allocation5], 1
    %s337 = scalar_lea.sflag [#allocation5], 1
    %338 = vsyncpa %s337, 1
    %339 = vsyncpa [#allocation6], 1
    %s340 = scalar_lea.sflag [#allocation6], 1
    %341 = vsyncpa %s340, 1

</llo_original>
